<compile_context>
chip_gen: v6e
topology: v6e:2x2x1
jax: 0.10.0
libtpu: 0.0.40
codegen_flags: <defaults>
</compile_context>

<pallas_src>
import time

import numpy as np

import jax
import jax.numpy as jnp
from jax.experimental import pallas as pl
from jax.experimental.pallas import tpu as pltpu

LANES = 128                    # output lane width (multiple of 128 -> unmasked vst)
_FILL_MAX_BLOCK_ROWS = 4096    # 4096*128*4 B = 2 MiB / block (4 MiB double-buffered)
_SEG_MAX_BLOCK_ROWS = 2048     # 1 MiB / block; compare/select chain holds a few
                               # block-sized temporaries, keep v5e VMEM headroom.
_SPLIT_BYTES = 512 * 1024      # outputs >= 512 KiB get >= 2 blocks (v7x dual-TC)


# ------------------------------ kernels ------------------------------------ #

def _single_ttl_kernel(fill_ref, o_ref):
    # fill_ref: SMEM int32[1]  (scalar-prefetched: single_ttl + hours)
    # o_ref:    VMEM int32[block_rows, LANES]
    o_ref[...] = jnp.full(o_ref.shape, fill_ref[0], jnp.int32)


def _per_feature_ttl_kernel(offsets_ref, vals_ref, o_ref):
    # offsets_ref: SMEM int32[F+1]  (segment boundaries: cumsum of feature_split)
    # vals_ref:    SMEM int32[F]    (per_feature_ttl[f] + hours, folded host-side)
    # o_ref:       VMEM int32[block_rows, LANES]
    block_rows, lanes = o_ref.shape
    block_elems = block_rows * lanes
    block_start = pl.program_id(0) * block_elems   # scalar, folded into compares
    block_end = block_start + block_elems

    row = jax.lax.broadcasted_iota(jnp.int32, o_ref.shape, 0)
    col = jax.lax.broadcasted_iota(jnp.int32, o_ref.shape, 1)
    pos = row * lanes + col                        # block-LOCAL flat position

    # Feature 0 starts at offset 0, so its fill doubles as the block init.
    o_ref[...] = jnp.full(o_ref.shape, vals_ref[0], jnp.int32)

    num_features = vals_ref.shape[0]
    # Segments are processed in ascending order, so a single lower-bound
    # compare per feature suffices: later (higher-offset) segments overwrite.
    # The padded tail (pos >= num_values) therefore holds the value of the
    # last intersecting segment - safe because the wrapper trims to
    # num_values (or documents the padding when trim=False).
    # TODO(synk): for large F switch to data-dependent tiling (scalar-prefetched
    # offsets in the out_spec index_map) so every block is a pure constant fill.
    for f in range(1, num_features):
        seg_start = offsets_ref[f]
        seg_end = offsets_ref[f + 1]

        # Scalar gate: skip segments that cannot intersect this block.
        @pl.when(jnp.logical_and(seg_start < block_end, seg_end > block_start))
        def _(f=f, seg_start=seg_start):
            o_ref[...] = jnp.where(pos >= seg_start - block_start,
                                   vals_ref[f], o_ref[...])


# ------------------------------ layout / wrappers --------------------------- #

def _layout(num_values: int, max_block_rows: int):
    """Dense (rows, 128) int32 slab layout: returns (rows_padded, block_rows, n_blocks)."""
    rows = -(-num_values // LANES)                 # ceil(N / 128)
    out_bytes = rows * LANES * 4
    if rows <= max_block_rows and out_bytes < _SPLIT_BYTES:
        block_rows, n_blocks = rows, 1             # single full-extent block
    else:
        # Derive the grid first, then the block (multiple of 8 rows); padding
        # is bounded by ~8 rows per block instead of a whole block.
        n_blocks = max(2, -(-rows // max_block_rows))
        per = -(-rows // n_blocks)
        block_rows = -(-per // 8) * 8
    rows_padded = n_blocks * block_rows
    if rows_padded * LANES >= 2 ** 31:
        raise ValueError("score count overflows int32 indexing")  # overflow guard
    return rows_padded, block_rows, n_blocks


def _finish(out2d: jnp.ndarray, num_values: int, trim: bool) -> jnp.ndarray:
    flat = out2d.reshape(-1)                       # row-major flatten: free, no copy
    if not trim or flat.shape[0] == num_values:
        return flat
    # Only copy when the padded length differs from num_values (< 128 + grid
    # rounding extra elements); the padding tail holds don't-care values.
    return flat[:num_values]


def single_ttl_scores(num_values: int, single_ttl: int, hours_ts: int,
                      *, use_pallas: bool = True, trim: bool = True) -> jnp.ndarray:
    if num_values <= 0:
        return jnp.zeros((0,), jnp.int32)
    fill_val = int(single_ttl) + int(hours_ts)
    if not use_pallas:
        # Recommended production path: a constant fill is best left to XLA.
        return jnp.full((num_values,), fill_val, dtype=jnp.int32)

    rows, block_rows, n_blocks = _layout(num_values, _FILL_MAX_BLOCK_ROWS)
    fill = jnp.asarray(np.array([fill_val], dtype=np.int32))
    out = pl.pallas_call(
        _single_ttl_kernel,
        out_shape=jax.ShapeDtypeStruct((rows, LANES), jnp.int32),
        grid_spec=pltpu.PrefetchScalarGridSpec(
            num_scalar_prefetch=1,
            grid=(n_blocks,),
            in_specs=[],
            out_specs=pl.BlockSpec((block_rows, LANES), lambda i, *_: (i, 0)),
        ),
        compiler_params=pltpu.CompilerParams(dimension_semantics=("parallel",)),
    )(fill)
    return _finish(out, num_values, trim)


def per_feature_ttl_scores(feature_split, per_feature_ttl, hours_ts: int,
                           *, trim: bool = True) -> jnp.ndarray:
    # Host-side (numpy) scalar prep: no device round-trips.
    split_np = np.asarray(feature_split, dtype=np.int64)
    ttl_np = np.asarray(per_feature_ttl, dtype=np.int64)
    assert split_np.ndim == 1 and split_np.shape == ttl_np.shape and split_np.size >= 1
    num_values = int(split_np.sum())
    if num_values <= 0:
        return jnp.zeros((0,), jnp.int32)

    rows, block_rows, n_blocks = _layout(num_values, _SEG_MAX_BLOCK_ROWS)

    offsets = np.zeros(split_np.shape[0] + 1, dtype=np.int32)
    offsets[1:] = np.cumsum(split_np)
    vals = (ttl_np + int(hours_ts)).astype(np.int32)   # fold hours host-side

    out = pl.pallas_call(
        _per_feature_ttl_kernel,
        out_shape=jax.ShapeDtypeStruct((rows, LANES), jnp.int32),
        grid_spec=pltpu.PrefetchScalarGridSpec(
            num_scalar_prefetch=2,
            grid=(n_blocks,),
            in_specs=[],
            out_specs=pl.BlockSpec((block_rows, LANES), lambda i, *_: (i, 0)),
        ),
        compiler_params=pltpu.CompilerParams(dimension_semantics=("parallel",)),
    )(jnp.asarray(offsets), jnp.asarray(vals))
    return _finish(out, num_values, trim)


# ----------------------- module-like wrapper -------------------------------- #

class HashZchEvictionModuleJax:
    """JAX/Pallas port of HashZchEvictionModule.forward."""

    THRESHOLD_POLICIES = ("SINGLE_TTL_EVICTION", "PER_FEATURE_TTL_EVICTION", "LRU_EVICTION")

    def __init__(self, policy_name: str, config: dict | None = None,
                 use_pallas: bool = True):
        self._policy_name = policy_name
        self._config = config or {}
        self._use_pallas = use_pallas

    def forward(self, values, feature_split=None, now: float | None = None):
        if self._policy_name not in self.THRESHOLD_POLICIES:
            return None, -1  # HashZchOptEvictionModule path
        now = time.time() if now is None else now
        hours = int(now / 3600)
        if self._policy_name == "PER_FEATURE_TTL_EVICTION":
            scores = per_feature_ttl_scores(
                feature_split, self._config["per_feature_ttl"], hours
            )
        else:  # SINGLE_TTL_EVICTION and LRU_EVICTION share HashZchSingleTtlScorer
            scores = single_ttl_scores(
                int(values.shape[0]), int(self._config["single_ttl"]), hours,
                use_pallas=self._use_pallas,
            )
        return scores, hours


# ------------------------------ main ---------------------------------------- #

if __name__ == "__main__":
    key = jax.random.PRNGKey(0)

    # Jagged feature: 3 features with 80/50/70 IDs -> 200 values total.
    feature_split = [80, 50, 70]
    num_values = sum(feature_split)
    values = jax.random.randint(key, (num_values,), 0, 2**31 - 1, dtype=jnp.int32)

    single_ttl = 24
    per_feature_ttl = [24, 48, 72]
    now = time.time()
    hours = int(now / 3600)

    # --- SINGLE_TTL_EVICTION (Pallas fill kernel, single block) ---
    mod_single = HashZchEvictionModuleJax(
        "SINGLE_TTL_EVICTION", {"features": ["f0", "f1", "f2"], "single_ttl": single_ttl}
    )
    scores_s, thr_s = mod_single.forward(values, now=now)
    scores_s = jax.block_until_ready(scores_s)
    exp_s = jnp.full((num_values,), single_ttl + hours, dtype=jnp.int32)
    assert scores_s.shape == (num_values,) and scores_s.dtype == jnp.int32
    assert bool(jnp.all(scores_s == exp_s)) and thr_s == hours

    # XLA fast path (recommended in production for constant fills) matches.
    scores_xla = single_ttl_scores(num_values, single_ttl, hours, use_pallas=False)
    assert bool(jnp.all(jax.block_until_ready(scores_xla) == exp_s))

    # --- PER_FEATURE_TTL_EVICTION (small, single block) ---
    mod_pf = HashZchEvictionModuleJax(
        "PER_FEATURE_TTL_EVICTION",
        {"features": ["f0", "f1", "f2"], "per_feature_ttl": per_feature_ttl},
    )
    scores_pf, thr_pf = mod_pf.forward(values, feature_split=feature_split, now=now)
    scores_pf = jax.block_until_ready(scores_pf)
    exp_pf = (
        jnp.repeat(
            jnp.asarray(per_feature_ttl, jnp.int32),
            jnp.asarray(feature_split, jnp.int32),
            total_repeat_length=num_values,
        )
        + hours
    )
    assert scores_pf.shape == (num_values,) and scores_pf.dtype == jnp.int32
    assert bool(jnp.all(scores_pf == exp_pf)) and thr_pf == hours

    # --- PER_FEATURE_TTL_EVICTION (multi-block grid + segment gating + empty split) ---
    big_split = [50000, 1, 0, 39999, 50000]          # 140000 values, one empty feature
    big_ttl = [6, 12, 18, 24, 48]
    big_values = jnp.zeros((sum(big_split),), jnp.int32)
    mod_pf_big = HashZchEvictionModuleJax(
        "PER_FEATURE_TTL_EVICTION",
        {"features": [f"f{i}" for i in range(len(big_split))], "per_feature_ttl": big_ttl},
    )
    scores_big, thr_big = mod_pf_big.forward(big_values, feature_split=big_split, now=now)
    scores_big = jax.block_until_ready(scores_big)
    exp_big = (
        jnp.repeat(
            jnp.asarray(big_ttl, jnp.int32),
            jnp.asarray(big_split, jnp.int32),
            total_repeat_length=sum(big_split),
        )
        + hours
    )
    assert scores_big.shape == (sum(big_split),) and bool(jnp.all(scores_big == exp_big))
    assert thr_big == hours

    # --- SINGLE_TTL_EVICTION (multi-block fill) ---
    scores_sb, thr_sb = mod_single.forward(big_values, now=now)
    scores_sb = jax.block_until_ready(scores_sb)
    assert scores_sb.shape == (sum(big_split),)
    assert bool(jnp.all(scores_sb == single_ttl + hours)) and thr_sb == hours

    # --- LRU_EVICTION (same scorer as single TTL) ---
    mod_lru = HashZchEvictionModuleJax(
        "LRU_EVICTION", {"features": ["f0", "f1", "f2"], "single_ttl": single_ttl}
    )
    scores_lru, thr_lru = mod_lru.forward(values, now=now)
    jax.block_until_ready(scores_lru)
    assert bool(jnp.all(scores_lru == exp_s)) and thr_lru == hours

    # --- non-threshold policy -> (None, -1), no kernel launch ---
    mod_opt = HashZchEvictionModuleJax("SOME_OTHER_POLICY")
    none_scores, thr_opt = mod_opt.forward(values, now=now)
    assert none_scores is None and thr_opt == -1

    print("KERNEL_OK")
</pallas_src>

<mosaic_0001>
module attributes {stable_mosaic.version = 11 : i64} {
  func.func @_single_ttl_kernel(%arg0: i32, %arg1: memref<1xi32, #tpu.memory_space<smem>>, %arg2: memref<2x128xi32, #tpu.memory_space<vmem>>) attributes {dimension_semantics = [#tpu.dimension_semantics<parallel>], iteration_bounds = array<i64: 1>, scalar_prefetch = 1 : i64, scratch_operands = 0 : i64, tpu.core_type = #tpu.core_type<tc>, window_params = [{transform_indices = @transform_0, window_bounds = array<i64: 2, 128>}]} {
    %c0 = arith.constant 0 : index
    %0 = memref.load %arg1[%c0] : memref<1xi32, #tpu.memory_space<smem>>
    %1 = vector.broadcast %0 : i32 to vector<2x128xi32>
    %c0_0 = arith.constant 0 : index
    %c0_1 = arith.constant 0 : index
    %2 = vector.load %arg2[%c0_0, %c0_1] : memref<2x128xi32, #tpu.memory_space<vmem>>, vector<2x128xi32>
    tpu.vector_store %arg2[%c0_0, %c0_1], %1 {strides = array<i32>} : memref<2x128xi32, #tpu.memory_space<vmem>>, vector<2x128xi32>,
    return
  }
  func.func @transform_0(%arg0: i32, %arg1: memref<1xi32, #tpu.memory_space<smem>>) -> (i32, i32) {
    %c0_i32 = arith.constant 0 : i32
    %c0_i32_0 = arith.constant 0 : i32
    return %arg0, %c0_i32 : i32, i32
  }
}

</mosaic_0001>

<llo_original>
// kernel: tpu_custom_call.1
$region0: #{tpu_custom_call.1}
  #allocation0 [shape = 'u32[]', space=smem, size = 0x4, offset = 0x4, fixed_abs, tag = 'smem constant byte address 0x4 - core index']
  #allocation1 [shape = 'u32[144,128]{1,0:T(1,128)}', space=vmem, size = 0x12000, scoped, tag = 'internal scratch']
  #allocation2 [shape = 's32[1]{0}', space=sflag, size = 0x4, scoped, tag = 'scoped memory for tpu_custom_call.1']
  #allocation3 [shape = 's32[1]{0:T(128)S(6)}', space=smem, size = 0x200, scoped, tag = 'prefetched SMEM operand 0']
  %s0 = inlined_call_operand.<no memory space> [shape: s32[1], index: 0, kind: input, shape index: {}]
  %s1 = inlined_call_operand.hbm [shape: s32[2,128], index: 1, kind: output, shape index: {}]
  %s2 = sld [smem:[#allocation0]]
  $region10: #{tpu_custom_call.1} parent=0
    _
  %s4 = ssub.s32 1, %s2
  %s5 = scalar_select 0, %s4, %s2
  %6 = sst [smem:[#allocation3]] %s0
  $region1: #{tpu_custom_call.1} parent=0
    #allocation4 [shape = 'u8[1024]{0}', space=vmem, size = 0x400, scoped, tag = 'output window, operand 0, single buffered']
    #allocation5 [shape = 's32[1]{0}', space=sflag, size = 0x4, scoped, tag = 'scoped memory for tpu_custom_call.1']
    %7 = vsyncpa [#allocation5], 0
    %s8 = sld [smem:[#allocation3]]
    %v9 = vstv %s8
    %10 = vst [vmem:[#allocation4] sm:$0x3] %v9
    // Predicated region
    $region2: #{tpu_custom_call.1} parent=1 // pred_check
      _
    $region3: #{tpu_custom_call.1} parent=1 // pred_check_branch
      %12 = sbr.rel (0) target = $region5
    $region4: #{tpu_custom_call.1} parent=1 // pred_region
      %s14 = ssub.s32 32, 32
      %15 = vsyncadd [#allocation5], %s14
      %s17 = sshll.u32 [#allocation4], 4
      %s18 = int_to_ptr.vmem [resolvable:$true] %s17
      %20 = dma.vmem_to_hbm [thread:$0]  %s18, 32, %s1, [#allocation5]
    $region5: #{tpu_custom_call.1} parent=1 // pred_fallthru
      _
    // Predicated region
    $region6: #{tpu_custom_call.1} parent=1 // pred_check
      _
    $region7: #{tpu_custom_call.1} parent=1 // pred_check_branch
      %22 = sbr.rel (0) target = $region9
    $region8: #{tpu_custom_call.1} parent=1 // pred_region
      %23 = dma.done [#allocation5], 32
    $region9: #{tpu_custom_call.1} parent=1 // pred_fallthru
      _
    %24 = vsyncpa [#allocation5], 1

</llo_original>
